<compile_context>
chip_gen: v7x
topology: tpu7x:2x2x1
jax: 0.10.0
libtpu: 0.0.40
codegen_flags: <defaults>
</compile_context>

<pallas_src>
import jax
import jax.numpy as jnp
from jax.experimental import pallas as pl
from jax.experimental.pallas import tpu as pltpu

_HIDDEN = 256


def _critic_kernel(s_ref, a_ref, w1s_ref, w1a_ref, b1_ref, w2_ref, b2_ref,
                   w3_ref, b3_ref, o_ref):
    """Fused 3-layer MLP on one batch tile.

    h1 = relu(state@W1s + action@W1a + b1)      (MXU, f32 accumulate)
    h2 = relu(h1@W2 + b2)                       (MXU, f32 accumulate)
    q  = sum(h2 * w3_row, axis=-1) + b3         (VPU multiply + XLU reduce)
    """
    mxu_dt = w2_ref.dtype  # bf16 by default; weights pre-cast once at init.

    h1 = (jnp.dot(s_ref[...].astype(mxu_dt), w1s_ref[...],
                  preferred_element_type=jnp.float32)
          + jnp.dot(a_ref[...].astype(mxu_dt), w1a_ref[...],
                    preferred_element_type=jnp.float32)
          + b1_ref[...])
    h1 = jnp.maximum(h1, 0.0)

    h2 = (jnp.dot(h1.astype(mxu_dt), w2_ref[...],
                  preferred_element_type=jnp.float32)
          + b2_ref[...])
    h2 = jnp.maximum(h2, 0.0)

    # Layer 3: (TB, H) * (1, H) -> lane-axis reduce -> (TB, 1).  Avoids a
    # padded MXU matmul and keeps the output lane-minimal.
    q = jnp.sum(h2 * w3_ref[...], axis=-1, keepdims=True) + b3_ref[...]
    o_ref[...] = q.astype(o_ref.dtype)


def critic_forward(state, action, params, *, block_b=512):
    """Pallas implementation of Critic.forward(state, action) -> [B, 1].

    block_b: batch tile.  Default 512 (multiple of 256 -> full MXU LHS,
    ~85% of HBM roofline per measurements).  On v7x, for small/medium B you
    may want block_b ~= round_up(B/2, 8) so the batch grid has >=2 tiles and
    both TensorCores are used; on single-TC v5e/v6e a single tile is best
    whenever B fits.
    """
    B, S = state.shape
    _, A = action.shape
    w1s, w1a, b1 = params["w1s"], params["w1a"], params["b1"]
    w2, b2 = params["w2"], params["b2"]
    w3, b3 = params["w3"], params["b3"]
    H = w2.shape[0]

    # Batch tile: multiple of 8 (sublane) unless it covers the whole batch.
    TB = min(block_b, B)
    if TB != B:
        TB = max(8, (TB // 8) * 8)
    grid = (pl.cdiv(B, TB),)

    # Activations tiled over the batch grid; weights/biases resident (block 0,0).
    act_spec = lambda cols: pl.BlockSpec((TB, cols), lambda i: (i, 0))
    res_spec = lambda shape: pl.BlockSpec(shape, lambda i: (0, 0))

    out = pl.pallas_call(
        _critic_kernel,
        out_shape=jax.ShapeDtypeStruct((B, 1), jnp.float32),
        grid_spec=pl.GridSpec(
            grid=grid,
            in_specs=[
                act_spec(S),            # state tile        (TB, S)
                act_spec(A),            # action tile       (TB, A)
                res_spec((S, H)),       # W1_state          bf16
                res_spec((A, H)),       # W1_action         bf16
                res_spec((1, H)),       # b1                f32
                res_spec((H, H)),       # W2                bf16
                res_spec((1, H)),       # b2                f32
                res_spec((1, H)),       # w3 row            f32
                res_spec((1, 1)),       # b3                f32
            ],
            out_specs=pl.BlockSpec((TB, 1), lambda i: (i, 0)),
        ),
        compiler_params=pltpu.CompilerParams(
            dimension_semantics=("parallel",)),
    )(state, action, w1s, w1a, b1, w2, b2, w3, b3)

    return out


def init_critic_params(key, state_dim, action_dim, hidden=_HIDDEN,
                       weight_dtype=jnp.bfloat16):
    """PyTorch-style init U(-1/sqrt(fan_in), 1/sqrt(fan_in)), kernel layout.

    Weights stored as [in_features, out_features]; W1 is pre-split into the
    state / action halves (fuses the torch.cat into the kernel); W1/W2 are
    pre-cast ONCE to `weight_dtype` (bf16 = native MXU input path); layer-3
    weight is kept as an f32 (1, hidden) row for the in-kernel VPU reduce.

    Note: the bf16 weight path diverges from the f32 PyTorch reference by
    ~bf16 quantization error (~0.4% relative); pass weight_dtype=jnp.float32
    for a bit-faithful (slower) path.
    """
    def linear(key, fan_in, fan_out):
        kw, kb = jax.random.split(key)
        bound = 1.0 / jnp.sqrt(fan_in)
        w = jax.random.uniform(kw, (fan_in, fan_out), jnp.float32, -bound, bound)
        b = jax.random.uniform(kb, (1, fan_out), jnp.float32, -bound, bound)
        return w, b

    k1, k2, k3 = jax.random.split(key, 3)
    w1, b1 = linear(k1, state_dim + action_dim, hidden)
    w2, b2 = linear(k2, hidden, hidden)
    w3, b3 = linear(k3, hidden, 1)

    return {
        "w1s": w1[:state_dim].astype(weight_dtype),
        "w1a": w1[state_dim:].astype(weight_dtype),
        "b1": b1,
        "w2": w2.astype(weight_dtype),
        "b2": b2,
        "w3": w3.T,                     # (1, hidden) row, f32
        "b3": b3.reshape(1, 1),         # (1, 1), f32
    }


def critic_forward_ref(state, action, params):
    """Pure-JAX reference mirroring the kernel's dtype policy exactly."""
    wdt = params["w2"].dtype
    h1 = jnp.maximum(
        jnp.dot(state.astype(wdt), params["w1s"],
                preferred_element_type=jnp.float32)
        + jnp.dot(action.astype(wdt), params["w1a"],
                  preferred_element_type=jnp.float32)
        + params["b1"], 0.0)
    h2 = jnp.maximum(
        jnp.dot(h1.astype(wdt), params["w2"],
                preferred_element_type=jnp.float32)
        + params["b2"], 0.0)
    return jnp.sum(h2 * params["w3"], axis=-1, keepdims=True) + params["b3"]


if __name__ == "__main__":
    key = jax.random.PRNGKey(0)
    k_state, k_action, k_params = jax.random.split(key, 3)

    batch = 64        # small but enough to exercise a multi-step batch grid
    state_dim = 17    # MuJoCo-style state
    action_dim = 6

    state = jax.random.normal(k_state, (batch, state_dim), jnp.float32)
    action = jax.random.normal(k_action, (batch, action_dim), jnp.float32)
    params = init_critic_params(k_params, state_dim, action_dim)

    # block_b=32 -> grid of 2 batch tiles with weights held VMEM-resident.
    q = critic_forward(state, action, params, block_b=32)
    q = jax.block_until_ready(q)

    q_ref = critic_forward_ref(state, action, params)
    assert q.shape == (batch, 1), q.shape
    assert jnp.allclose(q, q_ref, atol=1e-3, rtol=1e-3), (q, q_ref)

    print("KERNEL_OK")
</pallas_src>

<mosaic_0001>
module attributes {stable_mosaic.version = 11 : i64} {
  func.func @_critic_kernel(%arg0: i32, %arg1: memref<32x17xf32, #tpu.memory_space<vmem>>, %arg2: memref<32x6xf32, #tpu.memory_space<vmem>>, %arg3: memref<17x256xbf16, #tpu.memory_space<vmem>>, %arg4: memref<6x256xbf16, #tpu.memory_space<vmem>>, %arg5: memref<1x256xf32, #tpu.memory_space<vmem>>, %arg6: memref<256x256xbf16, #tpu.memory_space<vmem>>, %arg7: memref<1x256xf32, #tpu.memory_space<vmem>>, %arg8: memref<1x256xf32, #tpu.memory_space<vmem>>, %arg9: memref<1x1xf32, #tpu.memory_space<vmem>>, %arg10: memref<32x1xf32, #tpu.memory_space<vmem>>) attributes {dimension_semantics = [#tpu.dimension_semantics<parallel>], iteration_bounds = array<i64: 2>, scalar_prefetch = 0 : i64, scratch_operands = 0 : i64, tpu.core_type = #tpu.core_type<tc>, window_params = [{transform_indices = @transform_0, window_bounds = array<i64: 32, 17>}, {transform_indices = @transform_1, window_bounds = array<i64: 32, 6>}, {pipeline_mode = #tpu.pipeline_mode<synchronous>, transform_indices = @transform_2, window_bounds = array<i64: 17, 256>}, {pipeline_mode = #tpu.pipeline_mode<synchronous>, transform_indices = @transform_3, window_bounds = array<i64: 6, 256>}, {pipeline_mode = #tpu.pipeline_mode<synchronous>, transform_indices = @transform_4, window_bounds = array<i64: 1, 256>}, {pipeline_mode = #tpu.pipeline_mode<synchronous>, transform_indices = @transform_5, window_bounds = array<i64: 256, 256>}, {pipeline_mode = #tpu.pipeline_mode<synchronous>, transform_indices = @transform_6, window_bounds = array<i64: 1, 256>}, {pipeline_mode = #tpu.pipeline_mode<synchronous>, transform_indices = @transform_7, window_bounds = array<i64: 1, 256>}, {pipeline_mode = #tpu.pipeline_mode<synchronous>, transform_indices = @transform_8, window_bounds = array<i64: 1, 1>}, {transform_indices = @transform_9, window_bounds = array<i64: 32, 1>}]} {
    %c0 = arith.constant 0 : index
    %c0_0 = arith.constant 0 : index
    %0 = vector.load %arg1[%c0, %c0_0] : memref<32x17xf32, #tpu.memory_space<vmem>>, vector<32x17xf32>
    %1 = arith.truncf %0 : vector<32x17xf32> to vector<32x17xbf16>
    %c0_1 = arith.constant 0 : index
    %c0_2 = arith.constant 0 : index
    %2 = vector.load %arg3[%c0_1, %c0_2] : memref<17x256xbf16, #tpu.memory_space<vmem>>, vector<17x256xbf16>
    %cst = arith.constant dense<0.000000e+00> : vector<32x256xf32>
    %3 = tpu.matmul %1, %2, %cst {dimension_numbers = #tpu.dot_dimension_numbers<[1], [0], [0], [1], [0, 0, 1, 1], [], []>} : vector<32x17xbf16>, vector<17x256xbf16>, vector<32x256xf32> -> vector<32x256xf32>
    %c0_3 = arith.constant 0 : index
    %c0_4 = arith.constant 0 : index
    %4 = vector.load %arg2[%c0_3, %c0_4] : memref<32x6xf32, #tpu.memory_space<vmem>>, vector<32x6xf32>
    %5 = arith.truncf %4 : vector<32x6xf32> to vector<32x6xbf16>
    %c0_5 = arith.constant 0 : index
    %c0_6 = arith.constant 0 : index
    %6 = vector.load %arg4[%c0_5, %c0_6] : memref<6x256xbf16, #tpu.memory_space<vmem>>, vector<6x256xbf16>
    %cst_7 = arith.constant dense<0.000000e+00> : vector<32x256xf32>
    %7 = tpu.matmul %5, %6, %cst_7 {dimension_numbers = #tpu.dot_dimension_numbers<[1], [0], [0], [1], [0, 0, 1, 1], [], []>} : vector<32x6xbf16>, vector<6x256xbf16>, vector<32x256xf32> -> vector<32x256xf32>
    %8 = arith.addf %3, %7 : vector<32x256xf32>
    %c0_8 = arith.constant 0 : index
    %c0_9 = arith.constant 0 : index
    %9 = vector.load %arg5[%c0_8, %c0_9] : memref<1x256xf32, #tpu.memory_space<vmem>>, vector<1x256xf32>
    %10 = vector.broadcast %9 : vector<1x256xf32> to vector<32x256xf32>
    %11 = arith.addf %8, %10 : vector<32x256xf32>
    %cst_10 = arith.constant 0.000000e+00 : f32
    %12 = vector.broadcast %cst_10 : f32 to vector<32x256xf32>
    %13 = arith.maximumf %11, %12 : vector<32x256xf32>
    %14 = arith.truncf %13 : vector<32x256xf32> to vector<32x256xbf16>
    %c0_11 = arith.constant 0 : index
    %c0_12 = arith.constant 0 : index
    %15 = vector.load %arg6[%c0_11, %c0_12] : memref<256x256xbf16, #tpu.memory_space<vmem>>, vector<256x256xbf16>
    %cst_13 = arith.constant dense<0.000000e+00> : vector<32x256xf32>
    %16 = tpu.matmul %14, %15, %cst_13 {dimension_numbers = #tpu.dot_dimension_numbers<[1], [0], [0], [1], [0, 0, 1, 1], [], []>} : vector<32x256xbf16>, vector<256x256xbf16>, vector<32x256xf32> -> vector<32x256xf32>
    %c0_14 = arith.constant 0 : index
    %c0_15 = arith.constant 0 : index
    %17 = vector.load %arg7[%c0_14, %c0_15] : memref<1x256xf32, #tpu.memory_space<vmem>>, vector<1x256xf32>
    %18 = vector.broadcast %17 : vector<1x256xf32> to vector<32x256xf32>
    %19 = arith.addf %16, %18 : vector<32x256xf32>
    %cst_16 = arith.constant 0.000000e+00 : f32
    %20 = vector.broadcast %cst_16 : f32 to vector<32x256xf32>
    %21 = arith.maximumf %19, %20 : vector<32x256xf32>
    %c0_17 = arith.constant 0 : index
    %c0_18 = arith.constant 0 : index
    %22 = vector.load %arg8[%c0_17, %c0_18] : memref<1x256xf32, #tpu.memory_space<vmem>>, vector<1x256xf32>
    %23 = vector.broadcast %22 : vector<1x256xf32> to vector<32x256xf32>
    %24 = arith.mulf %21, %23 : vector<32x256xf32>
    %cst_19 = arith.constant dense<0.000000e+00> : vector<32xf32>
    %25 = vector.multi_reduction <add>, %24, %cst_19 [1] : vector<32x256xf32> to vector<32xf32>
    %26 = vector.shape_cast %25 : vector<32xf32> to vector<32x1xf32>
    %c0_20 = arith.constant 0 : index
    %c0_21 = arith.constant 0 : index
    %27 = vector.load %arg9[%c0_20, %c0_21] : memref<1x1xf32, #tpu.memory_space<vmem>>, vector<1x1xf32>
    %28 = vector.broadcast %27 : vector<1x1xf32> to vector<32x1xf32>
    %29 = arith.addf %26, %28 : vector<32x1xf32>
    %c0_22 = arith.constant 0 : index
    %c0_23 = arith.constant 0 : index
    %30 = vector.load %arg10[%c0_22, %c0_23] : memref<32x1xf32, #tpu.memory_space<vmem>>, vector<32x1xf32>
    tpu.vector_store %arg10[%c0_22, %c0_23], %29 {strides = array<i32>} : memref<32x1xf32, #tpu.memory_space<vmem>>, vector<32x1xf32>,
    return
  }
  func.func @transform_0(%arg0: i32) -> (i32, i32) {
    %c0_i32 = arith.constant 0 : i32
    %c0_i32_0 = arith.constant 0 : i32
    return %arg0, %c0_i32 : i32, i32
  }
  func.func @transform_1(%arg0: i32) -> (i32, i32) {
    %c0_i32 = arith.constant 0 : i32
    %c0_i32_0 = arith.constant 0 : i32
    return %arg0, %c0_i32 : i32, i32
  }
  func.func @transform_2(%arg0: i32) -> (i32, i32) {
    %c0_i32 = arith.constant 0 : i32
    %c0_i32_0 = arith.constant 0 : i32
    %c0_i32_1 = arith.constant 0 : i32
    return %c0_i32, %c0_i32_0 : i32, i32
  }
  func.func @transform_3(%arg0: i32) -> (i32, i32) {
    %c0_i32 = arith.constant 0 : i32
    %c0_i32_0 = arith.constant 0 : i32
    %c0_i32_1 = arith.constant 0 : i32
    return %c0_i32, %c0_i32_0 : i32, i32
  }
  func.func @transform_4(%arg0: i32) -> (i32, i32) {
    %c0_i32 = arith.constant 0 : i32
    %c0_i32_0 = arith.constant 0 : i32
    %c0_i32_1 = arith.constant 0 : i32
    return %c0_i32, %c0_i32_0 : i32, i32
  }
  func.func @transform_5(%arg0: i32) -> (i32, i32) {
    %c0_i32 = arith.constant 0 : i32
    %c0_i32_0 = arith.constant 0 : i32
    %c0_i32_1 = arith.constant 0 : i32
    return %c0_i32, %c0_i32_0 : i32, i32
  }
  func.func @transform_6(%arg0: i32) -> (i32, i32) {
    %c0_i32 = arith.constant 0 : i32
    %c0_i32_0 = arith.constant 0 : i32
    %c0_i32_1 = arith.constant 0 : i32
    return %c0_i32, %c0_i32_0 : i32, i32
  }
  func.func @transform_7(%arg0: i32) -> (i32, i32) {
    %c0_i32 = arith.constant 0 : i32
    %c0_i32_0 = arith.constant 0 : i32
    %c0_i32_1 = arith.constant 0 : i32
    return %c0_i32, %c0_i32_0 : i32, i32
  }
  func.func @transform_8(%arg0: i32) -> (i32, i32) {
    %c0_i32 = arith.constant 0 : i32
    %c0_i32_0 = arith.constant 0 : i32
    %c0_i32_1 = arith.constant 0 : i32
    return %c0_i32, %c0_i32_0 : i32, i32
  }
  func.func @transform_9(%arg0: i32) -> (i32, i32) {
    %c0_i32 = arith.constant 0 : i32
    %c0_i32_0 = arith.constant 0 : i32
    return %arg0, %c0_i32 : i32, i32
  }
}

</mosaic_0001>

<llo_original>
// kernel: tpu_custom_call.1
$region0: #{tpu_custom_call.1}
  #allocation0 [shape = 'u32[]', space=smem, size = 0x4, offset = 0x4, fixed_abs, tag = 'smem constant byte address 0x4 - core index']
  #allocation1 [shape = 'u32[144,128]{1,0:T(1,128)}', space=vmem, size = 0x12000, scoped, tag = 'internal scratch']
  #allocation2 [shape = 'f32[1,1]{1,0:T(1,128)S(1)}', space=vmem, size = 0x200, scoped, tag = 'scoped memory for tpu_custom_call.1']
  %s0 = inlined_call_operand.vmem [shape: f32[64,17], index: 0, kind: input, shape index: {}]
  %s1 = inlined_call_operand.vmem [shape: f32[64,6], index: 1, kind: input, shape index: {}]
  %s2 = inlined_call_operand.vmem [shape: bf16[17,256], index: 2, kind: input, shape index: {}]
  %s3 = inlined_call_operand.vmem [shape: bf16[6,256], index: 3, kind: input, shape index: {}]
  %s4 = inlined_call_operand.vmem [shape: f32[1,256], index: 4, kind: input, shape index: {}]
  %s5 = inlined_call_operand.hbm [shape: bf16[256,256], index: 5, kind: input, shape index: {}]
  %s6 = inlined_call_operand.vmem [shape: f32[1,256], index: 6, kind: input, shape index: {}]
  %s7 = inlined_call_operand.vmem [shape: f32[1,256], index: 7, kind: input, shape index: {}]
  %s8 = inlined_call_operand.<no memory space> [shape: f32[1,1], index: 8, kind: input, shape index: {}]
  %s9 = inlined_call_operand.vmem [shape: f32[64,1], index: 9, kind: output, shape index: {}]
  %s10 = sld [smem:[#allocation0]]
  $region73: #{tpu_custom_call.1} parent=0
    _
  %s12 = ssub.s32 1, %s10
  %s13 = scalar_select 0, %s12, %s10
  %v14 = vstv %s8
  %15 = vst [vmem:[#allocation2] sm:$0x1] %v14
  $region1: #{tpu_custom_call.1} parent=0
    #allocation3 [shape = 'u8[131072]{0}', space=vmem, size = 0x20000, scoped, tag = 'input window, operand 5, single buffered']
    #allocation4 [shape = 's32[2]{0}', space=sflag, size = 0x8, scoped, tag = 'scoped memory for tpu_custom_call.1']
    %16 = vsyncpa [#allocation4], 0
    loop: start=0, step=1, limit=4
    $region2: #{tpu_custom_call.1} parent=1 // loop_pre_header
      _
    $region3: #{tpu_custom_call.1} parent=1 // loop_header
      %s18 = sphi 0, %s22
      %p19 = scmp.ge.s32.totalorder %s18, 4
      %s28 = sphi 0, %s30
      %s31 = sphi 0, %s28
      %s32 = sphi 0, %s31
      %s48 = sphi 0, %s32
      %s54 = sphi 0, %s56
      %s57 = sphi 0, %s54
      %s58 = sphi 0, %s57
      %s74 = sphi 0, %s58
      %s78 = sphi 0, %s78
      %s80 = sphi 0, %s78
      %s81 = sphi 0, %s80
      %s95 = sphi 0, %s81
      %s99 = sphi 0, %s99
      %s101 = sphi 0, %s99
      %s102 = sphi 0, %s101
      %s116 = sphi 0, %s102
      %s120 = sphi 0, %s120
      %s122 = sphi 0, %s120
      %s123 = sphi 0, %s122
      %s137 = sphi 0, %s123
      %s141 = sphi 0, %s141
      %s143 = sphi 0, %s141
      %s144 = sphi 0, %s143
      %s158 = sphi 0, %s144
      %s162 = sphi 0, %s162
      %s164 = sphi 0, %s162
      %s165 = sphi 0, %s164
      %s179 = sphi 0, %s165
      %s183 = sphi 0, %s183
      %s185 = sphi 0, %s183
      %s186 = sphi 0, %s185
      %s200 = sphi 0, %s186
      %s204 = sphi 0, %s204
      %s206 = sphi 0, %s204
      %s207 = sphi 0, %s206
      %s221 = sphi 0, %s207
      %s227 = sphi 0, %s229
      %s230 = sphi 0, %s227
      %s231 = sphi 0, %s230
      %s247 = sphi 0, %s231
    $region4: #{tpu_custom_call.1} parent=1 // loop_header_branch
      %21 = sbr.rel (%p19) target = $region8
    $region5: #{tpu_custom_call.1} parent=1 // loop_body
      %s23 = ssub.s32 %s18, 1
      %s24 = ssub.s32 %s18, 2
      %s25 = sadd.s32 %s18, 1
      %s26 = ssub.s32 %s18, %s25
      %p27 = scmp.eq.s32.totalorder %s26, 0
      %s29 = sadd.s32 %s28, 1
      %s30 = scalar_select %p27, %s28, %s29
      %p33 = pneg %p27
      %p34 = scmp.eq.s32.totalorder %s18, 1
      %p35 = por %p33, %p34
      %p36 = scmp.ne.s32.totalorder %s28, %s31
      %p37 = scmp.eq.s32.totalorder %s18, 0
      %p38 = por %p36, %p37
      %p39 = scmp.ne.s32.totalorder %s28, %s31
      %p40 = scmp.eq.s32.totalorder %s23, 1
      %p41 = por %p39, %p40
      %p42 = scmp.ne.s32.totalorder %s31, %s32
      %p43 = scmp.eq.s32.totalorder %s23, 0
      %p44 = por %p42, %p43
      %p45 = scmp.ne.s32.totalorder %s31, %s32
      %p46 = scmp.eq.s32.totalorder %s24, 1
      %p47 = por %p45, %p46
      %p49 = scmp.ne.s32.totalorder %s32, %s48
      %p50 = scmp.eq.s32.totalorder %s24, 0
      %p51 = por %p49, %p50
      %s52 = ssub.s32 %s18, %s25
      %p53 = scmp.eq.s32.totalorder %s52, 0
      %s55 = sadd.s32 %s54, 1
      %s56 = scalar_select %p53, %s54, %s55
      %p59 = pneg %p53
      %p60 = scmp.eq.s32.totalorder %s18, 1
      %p61 = por %p59, %p60
      %p62 = scmp.ne.s32.totalorder %s54, %s57
      %p63 = scmp.eq.s32.totalorder %s18, 0
      %p64 = por %p62, %p63
      %p65 = scmp.ne.s32.totalorder %s54, %s57
      %p66 = scmp.eq.s32.totalorder %s23, 1
      %p67 = por %p65, %p66
      %p68 = scmp.ne.s32.totalorder %s57, %s58
      %p69 = scmp.eq.s32.totalorder %s23, 0
      %p70 = por %p68, %p69
      %p71 = scmp.ne.s32.totalorder %s57, %s58
      %p72 = scmp.eq.s32.totalorder %s24, 1
      %p73 = por %p71, %p72
      %p75 = scmp.ne.s32.totalorder %s58, %s74
      %p76 = scmp.eq.s32.totalorder %s24, 0
      %p77 = por %p75, %p76
      %s79 = sadd.s32 %s78, 1
      %p82 = scmp.eq.s32.totalorder %s18, 1
      %p83 = scmp.ne.s32.totalorder %s78, %s80
      %p84 = scmp.eq.s32.totalorder %s18, 0
      %p85 = por %p83, %p84
      %p86 = scmp.ne.s32.totalorder %s78, %s80
      %p87 = scmp.eq.s32.totalorder %s23, 1
      %p88 = por %p86, %p87
      %p89 = scmp.ne.s32.totalorder %s80, %s81
      %p90 = scmp.eq.s32.totalorder %s23, 0
      %p91 = por %p89, %p90
      %p92 = scmp.ne.s32.totalorder %s80, %s81
      %p93 = scmp.eq.s32.totalorder %s24, 1
      %p94 = por %p92, %p93
      %p96 = scmp.ne.s32.totalorder %s81, %s95
      %p97 = scmp.eq.s32.totalorder %s24, 0
      %p98 = por %p96, %p97
      %s100 = sadd.s32 %s99, 1
      %p103 = scmp.eq.s32.totalorder %s18, 1
      %p104 = scmp.ne.s32.totalorder %s99, %s101
      %p105 = scmp.eq.s32.totalorder %s18, 0
      %p106 = por %p104, %p105
      %p107 = scmp.ne.s32.totalorder %s99, %s101
      %p108 = scmp.eq.s32.totalorder %s23, 1
      %p109 = por %p107, %p108
      %p110 = scmp.ne.s32.totalorder %s101, %s102
      %p111 = scmp.eq.s32.totalorder %s23, 0
      %p112 = por %p110, %p111
      %p113 = scmp.ne.s32.totalorder %s101, %s102
      %p114 = scmp.eq.s32.totalorder %s24, 1
      %p115 = por %p113, %p114
      %p117 = scmp.ne.s32.totalorder %s102, %s116
      %p118 = scmp.eq.s32.totalorder %s24, 0
      %p119 = por %p117, %p118
      %s121 = sadd.s32 %s120, 1
      %p124 = scmp.eq.s32.totalorder %s18, 1
      %p125 = scmp.ne.s32.totalorder %s120, %s122
      %p126 = scmp.eq.s32.totalorder %s18, 0
      %p127 = por %p125, %p126
      %p128 = scmp.ne.s32.totalorder %s120, %s122
      %p129 = scmp.eq.s32.totalorder %s23, 1
      %p130 = por %p128, %p129
      %p131 = scmp.ne.s32.totalorder %s122, %s123
      %p132 = scmp.eq.s32.totalorder %s23, 0
      %p133 = por %p131, %p132
      %p134 = scmp.ne.s32.totalorder %s122, %s123
      %p135 = scmp.eq.s32.totalorder %s24, 1
      %p136 = por %p134, %p135
      %p138 = scmp.ne.s32.totalorder %s123, %s137
      %p139 = scmp.eq.s32.totalorder %s24, 0
      %p140 = por %p138, %p139
      %s142 = sadd.s32 %s141, 1
      %p145 = scmp.eq.s32.totalorder %s18, 1
      %p146 = scmp.ne.s32.totalorder %s141, %s143
      %p147 = scmp.eq.s32.totalorder %s18, 0
      %p148 = por %p146, %p147
      %p149 = scmp.ne.s32.totalorder %s141, %s143
      %p150 = scmp.eq.s32.totalorder %s23, 1
      %p151 = por %p149, %p150
      %p152 = scmp.ne.s32.totalorder %s143, %s144
      %p153 = scmp.eq.s32.totalorder %s23, 0
      %p154 = por %p152, %p153
      %p155 = scmp.ne.s32.totalorder %s143, %s144
      %p156 = scmp.eq.s32.totalorder %s24, 1
      %p157 = por %p155, %p156
      %p159 = scmp.ne.s32.totalorder %s144, %s158
      %p160 = scmp.eq.s32.totalorder %s24, 0
      %p161 = por %p159, %p160
      %s163 = sadd.s32 %s162, 1
      %p166 = scmp.eq.s32.totalorder %s18, 1
      %p167 = scmp.ne.s32.totalorder %s162, %s164
      %p168 = scmp.eq.s32.totalorder %s18, 0
      %p169 = por %p167, %p168
      %p170 = scmp.ne.s32.totalorder %s162, %s164
      %p171 = scmp.eq.s32.totalorder %s23, 1
      %p172 = por %p170, %p171
      %p173 = scmp.ne.s32.totalorder %s164, %s165
      %p174 = scmp.eq.s32.totalorder %s23, 0
      %p175 = por %p173, %p174
      %p176 = scmp.ne.s32.totalorder %s164, %s165
      %p177 = scmp.eq.s32.totalorder %s24, 1
      %p178 = por %p176, %p177
      %p180 = scmp.ne.s32.totalorder %s165, %s179
      %p181 = scmp.eq.s32.totalorder %s24, 0
      %p182 = por %p180, %p181
      %s184 = sadd.s32 %s183, 1
      %p187 = scmp.eq.s32.totalorder %s18, 1
      %p188 = scmp.ne.s32.totalorder %s183, %s185
      %p189 = scmp.eq.s32.totalorder %s18, 0
      %p190 = por %p188, %p189
      %p191 = scmp.ne.s32.totalorder %s183, %s185
      %p192 = scmp.eq.s32.totalorder %s23, 1
      %p193 = por %p191, %p192
      %p194 = scmp.ne.s32.totalorder %s185, %s186
      %p195 = scmp.eq.s32.totalorder %s23, 0
      %p196 = por %p194, %p195
      %p197 = scmp.ne.s32.totalorder %s185, %s186
      %p198 = scmp.eq.s32.totalorder %s24, 1
      %p199 = por %p197, %p198
      %p201 = scmp.ne.s32.totalorder %s186, %s200
      %p202 = scmp.eq.s32.totalorder %s24, 0
      %p203 = por %p201, %p202
      %s205 = sadd.s32 %s204, 1
      %p208 = scmp.eq.s32.totalorder %s18, 1
      %p209 = scmp.ne.s32.totalorder %s204, %s206
      %p210 = scmp.eq.s32.totalorder %s18, 0
      %p211 = por %p209, %p210
      %p212 = scmp.ne.s32.totalorder %s204, %s206
      %p213 = scmp.eq.s32.totalorder %s23, 1
      %p214 = por %p212, %p213
      %p215 = scmp.ne.s32.totalorder %s206, %s207
      %p216 = scmp.eq.s32.totalorder %s23, 0
      %p217 = por %p215, %p216
      %p218 = scmp.ne.s32.totalorder %s206, %s207
      %p219 = scmp.eq.s32.totalorder %s24, 1
      %p220 = por %p218, %p219
      %p222 = scmp.ne.s32.totalorder %s207, %s221
      %p223 = scmp.eq.s32.totalorder %s24, 0
      %p224 = por %p222, %p223
      %s225 = ssub.s32 %s18, %s25
      %p226 = scmp.eq.s32.totalorder %s225, 0
      %s228 = sadd.s32 %s227, 1
      %s229 = scalar_select %p226, %s227, %s228
      %p232 = pneg %p226
      %p233 = scmp.eq.s32.totalorder %s18, 1
      %p234 = por %p232, %p233
      %p235 = scmp.ne.s32.totalorder %s227, %s230
      %p236 = scmp.eq.s32.totalorder %s18, 0
      %p237 = por %p235, %p236
      %p238 = scmp.ne.s32.totalorder %s227, %s230
      %p239 = scmp.eq.s32.totalorder %s23, 1
      %p240 = por %p238, %p239
      %p241 = scmp.ne.s32.totalorder %s230, %s231
      %p242 = scmp.eq.s32.totalorder %s23, 0
      %p243 = por %p241, %p242
      %p244 = scmp.ne.s32.totalorder %s230, %s231
      %p245 = scmp.eq.s32.totalorder %s24, 1
      %p246 = por %p244, %p245
      %p248 = scmp.ne.s32.totalorder %s231, %s247
      %p249 = scmp.eq.s32.totalorder %s24, 0
      %p250 = por %p248, %p249
      %p251 = scmp.le.s32.totalorder 1, %s18
      %p252 = scmp.lt.s32.totalorder %s18, 3
      %p253 = pnand %p251, %p252
      %p254 = pneg %p253
      // Predicated region
      $region9: #{tpu_custom_call.1} parent=5 // pred_check
        _
      $region10: #{tpu_custom_call.1} parent=5 // pred_check_branch
        %256 = sbr.rel (%p253) target = $region12
      $region11: #{tpu_custom_call.1} parent=5 // pred_region
        %s257 = ssub.s32 %s18, 1
        // Predicated region
        $region13: #{tpu_custom_call.1} parent=11 // pred_check
          %p258 = pneg %p91
        $region14: #{tpu_custom_call.1} parent=11 // pred_check_branch
          %260 = sbr.rel (%p258) target = $region16
        $region15: #{tpu_custom_call.1} parent=11 // pred_region
          _
        $region16: #{tpu_custom_call.1} parent=11 // pred_fallthru
          _
        // Predicated region
        $region17: #{tpu_custom_call.1} parent=11 // pred_check
          %p261 = pneg %p112
        $region18: #{tpu_custom_call.1} parent=11 // pred_check_branch
          %263 = sbr.rel (%p261) target = $region20
        $region19: #{tpu_custom_call.1} parent=11 // pred_region
          _
        $region20: #{tpu_custom_call.1} parent=11 // pred_fallthru
          _
        // Predicated region
        $region21: #{tpu_custom_call.1} parent=11 // pred_check
          %p264 = pneg %p133
        $region22: #{tpu_custom_call.1} parent=11 // pred_check_branch
          %266 = sbr.rel (%p264) target = $region24
        $region23: #{tpu_custom_call.1} parent=11 // pred_region
          _
        $region24: #{tpu_custom_call.1} parent=11 // pred_fallthru
          _
        // Predicated region
        $region25: #{tpu_custom_call.1} parent=11 // pred_check
          %p267 = pneg %p154
        $region26: #{tpu_custom_call.1} parent=11 // pred_check_branch
          %269 = sbr.rel (%p267) target = $region28
        $region27: #{tpu_custom_call.1} parent=11 // pred_region
          %s271 = ssub.s32 4096, 4096
          %272 = vsyncadd [#allocation4], %s271
          %s273 = sshll.u32 [#allocation3], 4
          %s274 = int_to_ptr.vmem [resolvable:$true] %s273
          %279 = dma.hbm_to_vmem [thread:$0]  %s5, 4096, %s274, [#allocation4], 128, 128, 8
        $region28: #{tpu_custom_call.1} parent=11 // pred_fallthru
          _
        // Predicated region
        $region29: #{tpu_custom_call.1} parent=11 // pred_check
          %p280 = pneg %p175
        $region30: #{tpu_custom_call.1} parent=11 // pred_check_branch
          %282 = sbr.rel (%p280) target = $region32
        $region31: #{tpu_custom_call.1} parent=11 // pred_region
          _
        $region32: #{tpu_custom_call.1} parent=11 // pred_fallthru
          _
        // Predicated region
        $region33: #{tpu_custom_call.1} parent=11 // pred_check
          %p283 = pneg %p196
        $region34: #{tpu_custom_call.1} parent=11 // pred_check_branch
          %285 = sbr.rel (%p283) target = $region36
        $region35: #{tpu_custom_call.1} parent=11 // pred_region
          _
        $region36: #{tpu_custom_call.1} parent=11 // pred_fallthru
          _
        // Predicated region
        $region37: #{tpu_custom_call.1} parent=11 // pred_check
          %p286 = pneg %p217
        $region38: #{tpu_custom_call.1} parent=11 // pred_check_branch
          %288 = sbr.rel (%p286) target = $region40
        $region39: #{tpu_custom_call.1} parent=11 // pred_region
          _
        $region40: #{tpu_custom_call.1} parent=11 // pred_fallthru
          _
      $region12: #{tpu_custom_call.1} parent=5 // pred_fallthru
        _
      %p289 = scmp.lt.s32.totalorder %s18, 2
      // Predicated region
      $region41: #{tpu_custom_call.1} parent=5 // pred_check
        %p290 = pneg %p289
      $region42: #{tpu_custom_call.1} parent=5 // pred_check_branch
        %292 = sbr.rel (%p290) target = $region44
      $region43: #{tpu_custom_call.1} parent=5 // pred_region
        // Predicated region
        $region45: #{tpu_custom_call.1} parent=43 // pred_check
          %p293 = pneg %p38
        $region46: #{tpu_custom_call.1} parent=43 // pred_check_branch
          %295 = sbr.rel (%p293) target = $region48
        $region47: #{tpu_custom_call.1} parent=43 // pred_region
          %s296 = smul.u32 4, %s18
          %p297 = scmp.lt.s32.totalorder %s296, 7
          %s298 = scalar_select %p297, %s296, 7
          %s299 = smul.addr %s298, 8
          %s300 = scalar_lea.vmem %s0, %s299
          %s301 = smul.u32 4, %s18
        $region48: #{tpu_custom_call.1} parent=43 // pred_fallthru
          _
        // Predicated region
        $region49: #{tpu_custom_call.1} parent=43 // pred_check
          %p302 = pneg %p64
        $region50: #{tpu_custom_call.1} parent=43 // pred_check_branch
          %304 = sbr.rel (%p302) target = $region52
        $region51: #{tpu_custom_call.1} parent=43 // pred_region
          %s305 = smul.u32 4, %s18
          %p306 = scmp.lt.s32.totalorder %s305, 7
          %s307 = scalar_select %p306, %s305, 7
          %s308 = smul.addr %s307, 8
          %s309 = scalar_lea.vmem %s1, %s308
          %s310 = smul.u32 4, %s18
        $region52: #{tpu_custom_call.1} parent=43 // pred_fallthru
          _
      $region44: #{tpu_custom_call.1} parent=5 // pred_fallthru
        _
      %p311 = scmp.le.s32.totalorder 1, %s18
      %p312 = scmp.lt.s32.totalorder %s18, 3
      %p313 = pnand %p311, %p312
      %p314 = pneg %p313
      // Predicated region
      $region53: #{tpu_custom_call.1} parent=5 // pred_check
        _
      $region54: #{tpu_custom_call.1} parent=5 // pred_check_branch
        %316 = sbr.rel (%p313) target = $region56
      $region55: #{tpu_custom_call.1} parent=5 // pred_region
        %s317 = ssub.s32 %s18, 1
        // Predicated region
        $region57: #{tpu_custom_call.1} parent=55 // pred_check
          %p318 = pneg %p154
        $region58: #{tpu_custom_call.1} parent=55 // pred_check_branch
          %320 = sbr.rel (%p318) target = $region60
        $region59: #{tpu_custom_call.1} parent=55 // pred_region
          %321 = dma.done [#allocation4], 4096
        $region60: #{tpu_custom_call.1} parent=55 // pred_fallthru
          _
        %s322 = smul.u32 4, %s23
        %p323 = scmp.lt.s32.totalorder %s322, 7
        %s324 = scalar_select %p323, %s322, 7
        %s325 = smul.addr %s324, 8
        %s326 = scalar_lea.vmem %s0, %s325
        %p327 = pneg %p44
        %p328 = pneg %p41
        %s329 = smul.u32 4, %s23
        %p330 = scmp.lt.s32.totalorder %s329, 7
        %s331 = scalar_select %p330, %s329, 7
        %s332 = smul.addr %s331, 8
        %s333 = scalar_lea.vmem %s1, %s332
        %p334 = pneg %p70
        %p335 = pneg %p67
        %p336 = pneg %p91
        %p337 = pneg %p88
        %p338 = pneg %p112
        %p339 = pneg %p109
        %p340 = pneg %p133
        %p341 = pneg %p130
        %p342 = pneg %p154
        %p343 = pneg %p151
        %p344 = pneg %p175
        %p345 = pneg %p172
        %p346 = pneg %p196
        %p347 = pneg %p193
        %p348 = pneg %p217
        %p349 = pneg %p214
        %p350 = pneg %p243
        %p351 = pneg %p240
        %s352 = smul.u32 4, %s23
        %p353 = scmp.lt.s32.totalorder %s352, 7
        %s354 = scalar_select %p353, %s352, 7
        %s355 = smul.addr %s354, 8
        %s356 = scalar_lea.vmem %s9, %s355
        %s357 = smul.u32 4, %s23
        %p358 = scmp.lt.s32.totalorder %s357, 7
        %s359 = scalar_select %p358, %s357, 7
        %s360 = smul.addr %s359, 8
        %s361 = scalar_lea.vmem %s0, %s360
        %s362 = smul.u32 4, %s23
        %s363 = smul.u32 4, %s23
        %p364 = scmp.lt.s32.totalorder %s363, 7
        %s365 = scalar_select %p364, %s363, 7
        %s366 = smul.addr %s365, 8
        %s367 = scalar_lea.vmem %s1, %s366
        %s368 = smul.u32 4, %s23
        %s369 = smul.u32 4, %s23
        %p370 = scmp.lt.s32.totalorder %s369, 7
        %s371 = scalar_select %p370, %s369, 7
        %s372 = smul.addr %s371, 8
        %s373 = scalar_lea.vmem %s9, %s372
        %s374 = smul.u32 4, %s23
        %v376 = vld [vmem:[%s361] sm:$0xff]
        %v377 = vld [vmem:[%s361 + $0x8] sm:$0xff]
        %v378 = vld [vmem:[%s361 + $0x10] sm:$0xff]
        %v379 = vld [vmem:[%s361 + $0x18] sm:$0xff]
        %v380 = vpack.c.bf16 %v377, %v376
        %v381 = vpack.c.bf16 %v379, %v378
        %v382 = vld [vmem:[%s2] sm:$0xff]
        %v383 = vld [vmem:[%s2 + $0x8] sm:$0xff]
        %v384 = vld [vmem:[%s2 + $0x10] sm:$0x11]
        %v385 = vld [vmem:[%s367] sm:$0xff]
        %v386 = vld [vmem:[%s367 + $0x8] sm:$0xff]
        %v387 = vld [vmem:[%s367 + $0x10] sm:$0xff]
        %v388 = vld [vmem:[%s367 + $0x18] sm:$0xff]
        %v389 = vpack.c.bf16 %v386, %v385
        %v390 = vpack.c.bf16 %v388, %v387
        %v391 = vld [vmem:[%s3] sm:$0x77]
        %v393 = vunpack.c.l.b16 %v391
        %v394 = vunpack.c.h.b16 %v391
        %v395 = vpack.c.b16 %v393, %v393
        %v396 = vpack.c.b16 %v394, %v394
        %vm397 = vcmask 48128
        %v399 = vsel %vm397, %v389, 0
        %v402 = vsel %vm397, %v390, 0
        %vm404 = vcmask 1042432
        %v406 = vsel %vm404, %v395, 0
        %v409 = vsel %vm404, %v396, 0
        %411 = vmatprep.subr.bf16.mxu0 %v409
        %412 = vmatpush1.bf16.msra.mxu0 %v406
        %413 = vmatprep.subr.bf16.mxu0 0
        %414 = vmatpush1.bf16.msra.mxu0 0
        %415 = vmatprep.subr.bf16.mxu0 0
        %416 = vmatpush1.bf16.msra.mxu0 0
        %417 = vmatprep.subr.bf16.mxu0 0
        %418 = vmatpush1.bf16.msra.mxu0 0
        %419 = vmatprep.subr.bf16.mxu0 0
        %420 = vmatpush1.bf16.msra.mxu0 0
        %421 = vmatprep.subr.bf16.mxu0 0
        %422 = vmatpush1.bf16.msra.mxu0 0
        %423 = vmatprep.subr.bf16.mxu0 0
        %424 = vmatpush1.bf16.msra.mxu0 0
        %425 = vmatprep.subr.bf16.mxu0 0
        %426 = vmatpush1.bf16.msra.mxu0 0
        %427 = vmatprep.subr.bf16.mxu0 0
        %428 = vmatpush1.bf16.msra.mxu0 0
        %429 = vmatprep.subr.bf16.mxu0 0
        %430 = vmatpush1.bf16.msra.mxu0 0
        %431 = vmatprep.subr.bf16.mxu0 0
        %432 = vmatpush1.bf16.msra.mxu0 0
        %433 = vmatprep.subr.bf16.mxu0 0
        %434 = vmatpush1.bf16.msra.mxu0 0
        %435 = vmatprep.subr.bf16.mxu0 0
        %436 = vmatpush1.bf16.msra.mxu0 0
        %437 = vmatprep.subr.bf16.mxu0 0
        %438 = vmatpush1.bf16.msra.mxu0 0
        %439 = vmatprep.subr.bf16.mxu0 0
        %440 = vmatpush1.bf16.msra.mxu0 0
        %441 = vmatprep.subr.bf16.mxu0 0
        %442 = vmatpush1.bf16.msra.mxu0 0
        %443 = vmatprep.mubr.bf16.mxu0 0
        %444 = vmatmul.mubr.bf16.gmra.mrb[0].mxu0 %v399
        %v445 = vpop.f32.mrb[0].mxu0
        %v446 = vadd.f32 0.0, %v445
        %v447 = vpop.f32.mrb[0].mxu0
        %v448 = vadd.f32 0.0, %v447
        %v449 = vpop.f32.mrb[0].mxu0
        %v450 = vadd.f32 0.0, %v449
        %v451 = vpop.f32.mrb[0].mxu0
        %v452 = vadd.f32 0.0, %v451
        %453 = vmatprep.mubr.bf16.mxu0 0
        %454 = vmatmul.mubr.bf16.gmra.mrb[0].mxu0 %v402
        %v455 = vpop.f32.mrb[0].mxu0
        %v456 = vadd.f32 0.0, %v455
        %v457 = vpop.f32.mrb[0].mxu0
        %v458 = vadd.f32 0.0, %v457
        %v459 = vpop.f32.mrb[0].mxu0
        %v460 = vadd.f32 0.0, %v459
        %v461 = vpop.f32.mrb[0].mxu0
        %v462 = vadd.f32 0.0, %v461
        %463 = vdwg.mxu0
        %v467 = vunpack.c.l.b16 %v382
        %v468 = vunpack.c.h.b16 %v382
        %v469 = vunpack.c.l.b16 %v383
        %v470 = vunpack.c.h.b16 %v383
        %v471 = vunpack.c.l.b16 %v384
        %v472 = vunpack.c.h.b16 %v384
        %v473 = vpack.c.b16 %v469, %v467
        %v474 = vpack.c.b16 %v470, %v468
        %v475 = vpack.c.b16 %v471, %v471
        %v476 = vpack.c.b16 %v472, %v472
        %vm479 = vcmask 138240
        %v481 = vsel %vm479, %v380, 0
        %v484 = vsel %vm479, %v381, 0
        %vm486 = vcmask 1040384
        %v487 = vsel 0, 4294967295, 65535
        %v488 = vsel %vm486, %v487, 0
        %v490 = vand.u32 %v475, %v488
        %v493 = vand.u32 %v476, %v488
        %495 = vmatprep.subr.bf16.mxu0 %v474
        %496 = vmatpush1.bf16.msra.mxu0 %v473
        %497 = vmatprep.subr.bf16.mxu0 %v493
        %498 = vmatpush1.bf16.msra.mxu0 %v490
        %499 = vmatprep.subr.bf16.mxu0 0
        %500 = vmatpush1.bf16.msra.mxu0 0
        %501 = vmatprep.subr.bf16.mxu0 0
        %502 = vmatpush1.bf16.msra.mxu0 0
        %503 = vmatprep.subr.bf16.mxu0 0
        %504 = vmatpush1.bf16.msra.mxu0 0
        %505 = vmatprep.subr.bf16.mxu0 0
        %506 = vmatpush1.bf16.msra.mxu0 0
        %507 = vmatprep.subr.bf16.mxu0 0
        %508 = vmatpush1.bf16.msra.mxu0 0
        %509 = vmatprep.subr.bf16.mxu0 0
        %510 = vmatpush1.bf16.msra.mxu0 0
        %511 = vmatprep.subr.bf16.mxu0 0
        %512 = vmatpush1.bf16.msra.mxu0 0
        %513 = vmatprep.subr.bf16.mxu0 0
        %514 = vmatpush1.bf16.msra.mxu0 0
        %515 = vmatprep.subr.bf16.mxu0 0
        %516 = vmatpush1.bf16.msra.mxu0 0
        %517 = vmatprep.subr.bf16.mxu0 0
        %518 = vmatpush1.bf16.msra.mxu0 0
        %519 = vmatprep.subr.bf16.mxu0 0
        %520 = vmatpush1.bf16.msra.mxu0 0
        %521 = vmatprep.subr.bf16.mxu0 0
        %522 = vmatpush1.bf16.msra.mxu0 0
        %523 = vmatprep.subr.bf16.mxu0 0
        %524 = vmatpush1.bf16.msra.mxu0 0
        %525 = vmatprep.subr.bf16.mxu0 0
        %526 = vmatpush1.bf16.msra.mxu0 0
        %527 = vmatprep.mubr.bf16.mxu0 0
        %528 = vmatmul.mubr.bf16.gmra.mrb[0].mxu0 %v481
        %v529 = vpop.f32.mrb[0].mxu0
        %v530 = vadd.f32 %v446, %v529
        %v531 = vpop.f32.mrb[0].mxu0
        %v532 = vadd.f32 %v448, %v531
        %v533 = vpop.f32.mrb[0].mxu0
        %v534 = vadd.f32 %v450, %v533
        %v535 = vpop.f32.mrb[0].mxu0
        %v536 = vadd.f32 %v452, %v535
        %537 = vmatprep.mubr.bf16.mxu0 0
        %538 = vmatmul.mubr.bf16.gmra.mrb[0].mxu0 %v484
        %v539 = vpop.f32.mrb[0].mxu0
        %v540 = vadd.f32 %v456, %v539
        %v541 = vpop.f32.mrb[0].mxu0
        %v542 = vadd.f32 %v458, %v541
        %v543 = vpop.f32.mrb[0].mxu0
        %v544 = vadd.f32 %v460, %v543
        %v545 = vpop.f32.mrb[0].mxu0
        %v546 = vadd.f32 %v462, %v545
        %547 = vdwg.mxu0
        %v548 = vld [vmem:[%s4] sm:$0x3]
        %v550 = vlaneseq
        %v551 = vshrl.u32 %v550, 7
        %v552 = vsub.s32 0, %v551
        %v553 = vrot.slane %v548, %v552
        %v554 = vlaneseq
        %v555 = vshrl.u32 %v554, 7
        %v556 = vsub.s32 1, %v555
        %v557 = vrot.slane %v548, %v556
        %v560 = vadd.f32 %v530, %v553
        %v561 = vadd.f32 %v532, %v557
        %v562 = vadd.f32 %v534, %v553
        %v563 = vadd.f32 %v536, %v557
        %v564 = vadd.f32 %v540, %v553
        %v565 = vadd.f32 %v542, %v557
        %v566 = vadd.f32 %v544, %v553
        %v567 = vadd.f32 %v546, %v557
        %v568 = vmax.f32 %v560, 0.0
        %v569 = vmax.f32 %v561, 0.0
        %v570 = vmax.f32 %v562, 0.0
        %v571 = vmax.f32 %v563, 0.0
        %v572 = vmax.f32 %v564, 0.0
        %v573 = vmax.f32 %v565, 0.0
        %v574 = vmax.f32 %v566, 0.0
        %v575 = vmax.f32 %v567, 0.0
        %v576 = vpack.c.bf16 %v570, %v568
        %v577 = vpack.c.bf16 %v571, %v569
        %v578 = vpack.c.bf16 %v574, %v572
        %v579 = vpack.c.bf16 %v575, %v573
        %v580 = vld [vmem:[#allocation3] sm:$0xff]
        %v581 = vld [vmem:[#allocation3 + $0x8] sm:$0xff]
        %v582 = vld [vmem:[#allocation3 + $0x10] sm:$0xff]
        %v583 = vld [vmem:[#allocation3 + $0x18] sm:$0xff]
        %v584 = vld [vmem:[#allocation3 + $0x20] sm:$0xff]
        %v585 = vld [vmem:[#allocation3 + $0x28] sm:$0xff]
        %v586 = vld [vmem:[#allocation3 + $0x30] sm:$0xff]
        %v587 = vld [vmem:[#allocation3 + $0x38] sm:$0xff]
        %v588 = vld [vmem:[#allocation3 + $0x40] sm:$0xff]
        %v589 = vld [vmem:[#allocation3 + $0x48] sm:$0xff]
        %v590 = vld [vmem:[#allocation3 + $0x50] sm:$0xff]
        %v591 = vld [vmem:[#allocation3 + $0x58] sm:$0xff]
        %v592 = vld [vmem:[#allocation3 + $0x60] sm:$0xff]
        %v593 = vld [vmem:[#allocation3 + $0x68] sm:$0xff]
        %v594 = vld [vmem:[#allocation3 + $0x70] sm:$0xff]
        %v595 = vld [vmem:[#allocation3 + $0x78] sm:$0xff]
        %v596 = vld [vmem:[#allocation3 + $0x80] sm:$0xff]
        %v597 = vld [vmem:[#allocation3 + $0x88] sm:$0xff]
        %v598 = vld [vmem:[#allocation3 + $0x90] sm:$0xff]
        %v599 = vld [vmem:[#allocation3 + $0x98] sm:$0xff]
        %v600 = vld [vmem:[#allocation3 + $0xa0] sm:$0xff]
        %v601 = vld [vmem:[#allocation3 + $0xa8] sm:$0xff]
        %v602 = vld [vmem:[#allocation3 + $0xb0] sm:$0xff]
        %v603 = vld [vmem:[#allocation3 + $0xb8] sm:$0xff]
        %v604 = vld [vmem:[#allocation3 + $0xc0] sm:$0xff]
        %v605 = vld [vmem:[#allocation3 + $0xc8] sm:$0xff]
        %v606 = vld [vmem:[#allocation3 + $0xd0] sm:$0xff]
        %v607 = vld [vmem:[#allocation3 + $0xd8] sm:$0xff]
        %v608 = vld [vmem:[#allocation3 + $0xe0] sm:$0xff]
        %v609 = vld [vmem:[#allocation3 + $0xe8] sm:$0xff]
        %v610 = vld [vmem:[#allocation3 + $0xf0] sm:$0xff]
        %v611 = vld [vmem:[#allocation3 + $0xf8] sm:$0xff]
        %v612 = vld [vmem:[%s6] sm:$0x3]
        %v614 = vlaneseq
        %v615 = vshrl.u32 %v614, 7
        %v616 = vsub.s32 0, %v615
        %v617 = vrot.slane %v612, %v616
        %v618 = vlaneseq
        %v619 = vshrl.u32 %v618, 7
        %v620 = vsub.s32 1, %v619
        %v621 = vrot.slane %v612, %v620
        %v656 = vunpack.c.l.b16 %v580
        %v657 = vunpack.c.h.b16 %v580
        %v658 = vunpack.c.l.b16 %v581
        %v659 = vunpack.c.h.b16 %v581
        %v660 = vunpack.c.l.b16 %v582
        %v661 = vunpack.c.h.b16 %v582
        %v662 = vunpack.c.l.b16 %v583
        %v663 = vunpack.c.h.b16 %v583
        %v664 = vunpack.c.l.b16 %v584
        %v665 = vunpack.c.h.b16 %v584
        %v666 = vunpack.c.l.b16 %v585
        %v667 = vunpack.c.h.b16 %v585
        %v668 = vunpack.c.l.b16 %v586
        %v669 = vunpack.c.h.b16 %v586
        %v670 = vunpack.c.l.b16 %v587
        %v671 = vunpack.c.h.b16 %v587
        %v672 = vunpack.c.l.b16 %v588
        %v673 = vunpack.c.h.b16 %v588
        %v674 = vunpack.c.l.b16 %v589
        %v675 = vunpack.c.h.b16 %v589
        %v676 = vunpack.c.l.b16 %v590
        %v677 = vunpack.c.h.b16 %v590
        %v678 = vunpack.c.l.b16 %v591
        %v679 = vunpack.c.h.b16 %v591
        %v680 = vunpack.c.l.b16 %v592
        %v681 = vunpack.c.h.b16 %v592
        %v682 = vunpack.c.l.b16 %v593
        %v683 = vunpack.c.h.b16 %v593
        %v684 = vunpack.c.l.b16 %v594
        %v685 = vunpack.c.h.b16 %v594
        %v686 = vunpack.c.l.b16 %v595
        %v687 = vunpack.c.h.b16 %v595
        %v688 = vunpack.c.l.b16 %v596
        %v689 = vunpack.c.h.b16 %v596
        %v690 = vunpack.c.l.b16 %v597
        %v691 = vunpack.c.h.b16 %v597
        %v692 = vunpack.c.l.b16 %v598
        %v693 = vunpack.c.h.b16 %v598
        %v694 = vunpack.c.l.b16 %v599
        %v695 = vunpack.c.h.b16 %v599
        %v696 = vunpack.c.l.b16 %v600
        %v697 = vunpack.c.h.b16 %v600
        %v698 = vunpack.c.l.b16 %v601
        %v699 = vunpack.c.h.b16 %v601
        %v700 = vunpack.c.l.b16 %v602
        %v701 = vunpack.c.h.b16 %v602
        %v702 = vunpack.c.l.b16 %v603
        %v703 = vunpack.c.h.b16 %v603
        %v704 = vunpack.c.l.b16 %v604
        %v705 = vunpack.c.h.b16 %v604
        %v706 = vunpack.c.l.b16 %v605
        %v707 = vunpack.c.h.b16 %v605
        %v708 = vunpack.c.l.b16 %v606
        %v709 = vunpack.c.h.b16 %v606
        %v710 = vunpack.c.l.b16 %v607
        %v711 = vunpack.c.h.b16 %v607
        %v712 = vunpack.c.l.b16 %v608
        %v713 = vunpack.c.h.b16 %v608
        %v714 = vunpack.c.l.b16 %v609
        %v715 = vunpack.c.h.b16 %v609
        %v716 = vunpack.c.l.b16 %v610
        %v717 = vunpack.c.h.b16 %v610
        %v718 = vunpack.c.l.b16 %v611
        %v719 = vunpack.c.h.b16 %v611
        %v720 = vpack.c.b16 %v658, %v656
        %v721 = vpack.c.b16 %v659, %v657
        %v722 = vpack.c.b16 %v662, %v660
        %v723 = vpack.c.b16 %v663, %v661
        %v724 = vpack.c.b16 %v666, %v664
        %v725 = vpack.c.b16 %v667, %v665
        %v726 = vpack.c.b16 %v670, %v668
        %v727 = vpack.c.b16 %v671, %v669
        %v728 = vpack.c.b16 %v674, %v672
        %v729 = vpack.c.b16 %v675, %v673
        %v730 = vpack.c.b16 %v678, %v676
        %v731 = vpack.c.b16 %v679, %v677
        %v732 = vpack.c.b16 %v682, %v680
        %v733 = vpack.c.b16 %v683, %v681
        %v734 = vpack.c.b16 %v686, %v684
        %v735 = vpack.c.b16 %v687, %v685
        %v736 = vpack.c.b16 %v690, %v688
        %v737 = vpack.c.b16 %v691, %v689
        %v738 = vpack.c.b16 %v694, %v692
        %v739 = vpack.c.b16 %v695, %v693
        %v740 = vpack.c.b16 %v698, %v696
        %v741 = vpack.c.b16 %v699, %v697
        %v742 = vpack.c.b16 %v702, %v700
        %v743 = vpack.c.b16 %v703, %v701
        %v744 = vpack.c.b16 %v706, %v704
        %v745 = vpack.c.b16 %v707, %v705
        %v746 = vpack.c.b16 %v710, %v708
        %v747 = vpack.c.b16 %v711, %v709
        %v748 = vpack.c.b16 %v714, %v712
        %v749 = vpack.c.b16 %v715, %v713
        %v750 = vpack.c.b16 %v718, %v716
        %v751 = vpack.c.b16 %v719, %v717
        %784 = vmatprep.subr.bf16.mxu0 %v721
        %785 = vmatpush1.bf16.msra.mxu0 %v720
        %786 = vmatprep.subr.bf16.mxu0 %v723
        %787 = vmatpush1.bf16.msra.mxu0 %v722
        %788 = vmatprep.subr.bf16.mxu0 %v725
        %789 = vmatpush1.bf16.msra.mxu0 %v724
        %790 = vmatprep.subr.bf16.mxu0 %v727
        %791 = vmatpush1.bf16.msra.mxu0 %v726
        %792 = vmatprep.subr.bf16.mxu0 %v729
        %793 = vmatpush1.bf16.msra.mxu0 %v728
        %794 = vmatprep.subr.bf16.mxu0 %v731
        %795 = vmatpush1.bf16.msra.mxu0 %v730
        %796 = vmatprep.subr.bf16.mxu0 %v733
        %797 = vmatpush1.bf16.msra.mxu0 %v732
        %798 = vmatprep.subr.bf16.mxu0 %v735
        %799 = vmatpush1.bf16.msra.mxu0 %v734
        %800 = vmatprep.subr.bf16.mxu0 %v737
        %801 = vmatpush1.bf16.msra.mxu0 %v736
        %802 = vmatprep.subr.bf16.mxu0 %v739
        %803 = vmatpush1.bf16.msra.mxu0 %v738
        %804 = vmatprep.subr.bf16.mxu0 %v741
        %805 = vmatpush1.bf16.msra.mxu0 %v740
        %806 = vmatprep.subr.bf16.mxu0 %v743
        %807 = vmatpush1.bf16.msra.mxu0 %v742
        %808 = vmatprep.subr.bf16.mxu0 %v745
        %809 = vmatpush1.bf16.msra.mxu0 %v744
        %810 = vmatprep.subr.bf16.mxu0 %v747
        %811 = vmatpush1.bf16.msra.mxu0 %v746
        %812 = vmatprep.subr.bf16.mxu0 %v749
        %813 = vmatpush1.bf16.msra.mxu0 %v748
        %814 = vmatprep.subr.bf16.mxu0 %v751
        %815 = vmatpush1.bf16.msra.mxu0 %v750
        %816 = vmatprep.mubr.bf16.mxu0 %v577
        %817 = vmatmul.mubr.bf16.gmra.mrb[0].mxu0 %v576
        %v818 = vpop.f32.mrb[0].mxu0
        %v819 = vadd.f32 %v617, %v818
        %v820 = vpop.f32.mrb[0].mxu0
        %v821 = vadd.f32 %v621, %v820
        %v822 = vpop.f32.mrb[0].mxu0
        %v823 = vadd.f32 %v617, %v822
        %v824 = vpop.f32.mrb[0].mxu0
        %v825 = vadd.f32 %v621, %v824
        %826 = vmatprep.mubr.bf16.mxu0 %v579
        %827 = vmatmul.mubr.bf16.gmra.mrb[0].mxu0 %v578
        %v828 = vpop.f32.mrb[0].mxu0
        %v829 = vadd.f32 %v617, %v828
        %v830 = vpop.f32.mrb[0].mxu0
        %v831 = vadd.f32 %v621, %v830
        %v832 = vpop.f32.mrb[0].mxu0
        %v833 = vadd.f32 %v617, %v832
        %v834 = vpop.f32.mrb[0].mxu0
        %v835 = vadd.f32 %v621, %v834
        %836 = vdwg.mxu0
        %v837 = vmax.f32 %v819, 0.0
        %v838 = vmax.f32 %v821, 0.0
        %v839 = vmax.f32 %v823, 0.0
        %v840 = vmax.f32 %v825, 0.0
        %v841 = vmax.f32 %v829, 0.0
        %v842 = vmax.f32 %v831, 0.0
        %v843 = vmax.f32 %v833, 0.0
        %v844 = vmax.f32 %v835, 0.0
        %v845 = vld [vmem:[%s7] sm:$0x3]
        %v847 = vlaneseq
        %v848 = vshrl.u32 %v847, 7
        %v849 = vsub.s32 0, %v848
        %v850 = vrot.slane %v845, %v849
        %v851 = vlaneseq
        %v852 = vshrl.u32 %v851, 7
        %v853 = vsub.s32 1, %v852
        %v854 = vrot.slane %v845, %v853
        %v857 = vmul.f32 %v837, %v850
        %v858 = vmul.f32 %v838, %v854
        %v859 = vmul.f32 %v839, %v850
        %v860 = vmul.f32 %v840, %v854
        %v861 = vmul.f32 %v841, %v850
        %v862 = vmul.f32 %v842, %v854
        %v863 = vmul.f32 %v843, %v850
        %v864 = vmul.f32 %v844, %v854
        %v865 = vadd.f32 %v857, %v858
        %866 = vadd.xlane.f32.xlu0 %v865
        %v867 = vpop.xlane.xlu0 %866
        %v868 = vadd.f32 %v859, %v860
        %869 = vadd.xlane.f32.xlu0 %v868
        %v870 = vpop.xlane.xlu0 %869
        %v871 = vadd.f32 %v861, %v862
        %872 = vadd.xlane.f32.xlu0 %v871
        %v873 = vpop.xlane.xlu0 %872
        %v874 = vadd.f32 %v863, %v864
        %875 = vadd.xlane.f32.xlu0 %v874
        %v876 = vpop.xlane.xlu0 %875
        %v877 = vld [vmem:[#allocation2] sm:$0x1]
        %v879 = vlaneseq
        %v880 = vshrl.u32 %v879, 7
        %v881 = vsub.s32 0, %v880
        %v882 = vrot.slane %v877, %v881
        %v884 = vadd.f32 %v867, %v882
        %v885 = vadd.f32 %v870, %v882
        %v886 = vadd.f32 %v873, %v882
        %v887 = vadd.f32 %v876, %v882
        %vm888 = vcmask 7168
        %889 = vst.msk [vmem:[%s373] sm:$0xff] %vm888, %v884
        %890 = vst.msk [vmem:[%s373 + $0x8] sm:$0xff] %vm888, %v885
        %891 = vst.msk [vmem:[%s373 + $0x10] sm:$0xff] %vm888, %v886
        %892 = vst.msk [vmem:[%s373 + $0x18] sm:$0xff] %vm888, %v887
        %s893 = smul.u32 4, %s23
        %p894 = scmp.lt.s32.totalorder %s893, 7
        %s895 = scalar_select %p894, %s893, 7
        %s896 = smul.addr %s895, 8
        %s897 = scalar_lea.vmem %s9, %s896
        // Predicated region
        $region61: #{tpu_custom_call.1} parent=55 // pred_check
          %p898 = pneg %p240
        $region62: #{tpu_custom_call.1} parent=55 // pred_check_branch
          %900 = sbr.rel (%p898) target = $region64
        $region63: #{tpu_custom_call.1} parent=55 // pred_region
          %s901 = smul.u32 4, %s23
        $region64: #{tpu_custom_call.1} parent=55 // pred_fallthru
          _
      $region56: #{tpu_custom_call.1} parent=5 // pred_fallthru
        _
      %p902 = scmp.le.s32.totalorder 2, %s18
      // Predicated region
      $region65: #{tpu_custom_call.1} parent=5 // pred_check
        %p903 = pneg %p902
      $region66: #{tpu_custom_call.1} parent=5 // pred_check_branch
        %905 = sbr.rel (%p903) target = $region68
      $region67: #{tpu_custom_call.1} parent=5 // pred_region
        %s906 = ssub.s32 %s18, 2
        // Predicated region
        $region69: #{tpu_custom_call.1} parent=67 // pred_check
          %p907 = pneg %p246
        $region70: #{tpu_custom_call.1} parent=67 // pred_check_branch
          %909 = sbr.rel (%p907) target = $region72
        $region71: #{tpu_custom_call.1} parent=67 // pred_region
          %s910 = smul.u32 4, %s24
          %p911 = scmp.lt.s32.totalorder %s910, 7
          %s912 = scalar_select %p911, %s910, 7
          %s913 = smul.addr %s912, 8
          %s914 = scalar_lea.vmem %s9, %s913
        $region72: #{tpu_custom_call.1} parent=67 // pred_fallthru
          _
      $region68: #{tpu_custom_call.1} parent=5 // pred_fallthru
        _
    $region6: #{tpu_custom_call.1} parent=1 // loop_footer
      %s22 = sadd.s32 1, %s18
    $region7: #{tpu_custom_call.1} parent=1 // loop_footer_branch
      %17 = sbr.rel target = $region3
    $region8: #{tpu_custom_call.1} parent=1 // loop_exit
      _
    %915 = vsyncpa [#allocation4], 1
    %s916 = scalar_lea.sflag [#allocation4], 1
    %917 = vsyncpa %s916, 1

</llo_original>
